<compile_context>
chip_gen: v5e
topology: v5e:2x2
jax: 0.10.0
libtpu: 0.0.40
codegen_flags: <defaults>
</compile_context>

<pallas_src>
import functools
import math

import jax
import jax.numpy as jnp
from jax import lax
from jax.experimental import pallas as pl
from jax.experimental.pallas import tpu as pltpu


_PARAM_KEYS = ("w1", "b1", "w2", "b2", "w3", "b3")


def _round_up(a, m):
    return ((a + m - 1) // m) * m


def _cdiv(a, b):
    return -(-a // b)


def _bce_with_logits(z, y):
    # torch.nn.BCEWithLogitsLoss numerically stable form:
    #   max(z, 0) - z*y + log(1 + exp(-|z|))
    return jnp.maximum(z, 0.0) - z * y + jnp.log(1.0 + jnp.exp(-jnp.abs(z)))


# ------------------------------ Pallas kernel -------------------------------
def _binary_mask_kernel(x_ref, c_ref, w1_ref, b1_ref, w2_ref, b2_ref,
                        w3_ref, b3_ref, out_ref, *, hidden, ncond, chunk):
    """One grid step over a (br, 128) batch slab.

    x_ref, out_ref : (br, 128) VMEM        -- batch dense on sublanes x lanes
    c_ref          : (ncond, br, 128) VMEM -- one dense slab per conditioner feature
    weight refs    : SMEM, read as scalars -- unrolled VPU MACs, MXU stays idle
    """
    br = out_ref.shape[0]
    nchunks = br // chunk          # static; chunk divides br by construction

    # Hoist every weight/bias scalar read out of the chunk loop.
    W1 = [[w1_ref[j, k] for k in range(ncond)] for j in range(hidden)]
    B1 = [b1_ref[j] for j in range(hidden)]
    W2 = [[w2_ref[j, k] for k in range(hidden)] for j in range(hidden)]
    B2 = [b2_ref[j] for j in range(hidden)]
    W3 = [w3_ref[j] for j in range(hidden)]
    B3 = b3_ref[0]

    def body(s, carry):
        r0 = pl.multiple_of(s * chunk, chunk)
        rows = pl.ds(r0, chunk)

        # conditioner features for this chunk: ncond dense (chunk, 128) slabs
        c = [c_ref[k, rows, :] for k in range(ncond)]

        # layer 1: Linear(ncond -> hidden) + tanh  (unrolled scalar-weight MACs)
        h1 = []
        for j in range(hidden):
            acc = c[0] * W1[j][0]
            for k in range(1, ncond):
                acc = acc + c[k] * W1[j][k]
            h1.append(jnp.tanh(acc + B1[j]))

        # layer 2: Linear(hidden -> hidden) + tanh, fused with
        # layer 3: Linear(hidden -> 1) accumulated directly into z
        z = None
        for j in range(hidden):
            acc = h1[0] * W2[j][0]
            for k in range(1, hidden):
                acc = acc + h1[k] * W2[j][k]
            h2j = jnp.tanh(acc + B2[j])
            z = h2j * W3[j] if z is None else z + h2j * W3[j]
        z = z + B3

        out_ref[rows, :] = _bce_with_logits(z, x_ref[rows, :])
        return carry

    lax.fori_loop(0, nchunks, body, 0)


# -------------------------------- wrapper ------------------------------------
def binary_mask_forward(x, cond_inp, params, *, tile_n=65536, chunk_rows=16):
    """Pallas forward.  x: (N,) or (N,1) targets, cond_inp: (N, C) -> (N,) loss."""
    x = jnp.asarray(x, jnp.float32).reshape(-1)
    cond = jnp.asarray(cond_inp, jnp.float32)
    N, C = cond.shape
    if C < 1:
        raise NotImplementedError("num_cond == 0 path is not implemented (see TODO).")

    w1, b1, w2, b2, w3, b3 = [jnp.asarray(params[k], jnp.float32)
                              for k in _PARAM_KEYS]
    H = w1.shape[0]
    chunk_rows = max(8, _round_up(int(chunk_rows), 8))

    # Batch as dense (rows, 128) slabs.
    R = _cdiv(N, 128)
    Np = R * 128
    pad = Np - N
    x_slab = jnp.pad(x, (0, pad)).reshape(R, 128)
    # Single fused pad+transpose copy of cond; (C, R, 128) gives contiguous,
    # large-granule per-feature DMAs and dense per-feature slabs in the kernel.
    cond_slab = jnp.pad(cond, ((0, pad), (0, 0))).T.reshape(C, R, 128)

    # Rows per grid step: large enough to amortize the ~0.35us per-step overhead,
    # capped so the grid has >=2 steps when possible (feeds both v7x TensorCores),
    # and rounded so the in-kernel chunk loop divides it evenly.
    br_req = _round_up(max(int(tile_n), 128) // 128, chunk_rows)
    br_cap = _round_up(_cdiv(R, 2), chunk_rows)
    br = min(br_req, br_cap)
    if br >= R:
        br = R
    chunk = chunk_rows if (br % chunk_rows == 0) else br
    grid = (_cdiv(R, br),)

    kernel = functools.partial(_binary_mask_kernel,
                               hidden=H, ncond=C, chunk=chunk)
    smem_spec = pl.BlockSpec(memory_space=pltpu.MemorySpace.SMEM)

    out = pl.pallas_call(
        kernel,
        out_shape=jax.ShapeDtypeStruct((R, 128), jnp.float32),
        grid=grid,
        in_specs=[
            pl.BlockSpec((br, 128), lambda i: (i, 0)),        # targets
            pl.BlockSpec((C, br, 128), lambda i: (0, i, 0)),  # conditioner slabs
            smem_spec, smem_spec, smem_spec,                  # w1, b1, w2
            smem_spec, smem_spec, smem_spec,                  # b2, w3, b3
        ],
        out_specs=pl.BlockSpec((br, 128), lambda i: (i, 0)),
        compiler_params=pltpu.CompilerParams(
            dimension_semantics=("parallel",)),
    )(x_slab, cond_slab,
      w1, b1, w2, b2, w3.reshape(H), b3.reshape(1))

    return out.reshape(-1)[:N]


def binary_mask_forward_ref(x, cond_inp, params):
    """Pure-JAX reference (same math, no Pallas)."""
    x = jnp.asarray(x, jnp.float32).reshape(-1, 1)
    cond = jnp.asarray(cond_inp, jnp.float32)
    w1, b1, w2, b2, w3, b3 = [jnp.asarray(params[k], jnp.float32)
                              for k in _PARAM_KEYS]
    h = jnp.tanh(cond @ w1.T + b1)
    h = jnp.tanh(h @ w2.T + b2)
    z = h @ w3.T + b3                                   # (N, 1) logits
    return _bce_with_logits(z, x)[:, 0]


# ------------------------------ parameter init ------------------------------
def init_params(key, num_cond, hidden_dim):
    """torch.nn.Linear default init; weights in torch (out_dim, in_dim) layout."""
    def lin(k, fan_in, fan_out):
        kw, kb = jax.random.split(k)
        bound = 1.0 / math.sqrt(fan_in)
        w = jax.random.uniform(kw, (fan_out, fan_in), jnp.float32, -bound, bound)
        b = jax.random.uniform(kb, (fan_out,), jnp.float32, -bound, bound)
        return w, b

    ks = jax.random.split(key, 3)
    p = {}
    p["w1"], p["b1"] = lin(ks[0], num_cond, hidden_dim)
    p["w2"], p["b2"] = lin(ks[1], hidden_dim, hidden_dim)
    p["w3"], p["b3"] = lin(ks[2], hidden_dim, 1)
    return p


if __name__ == "__main__":
    # hidden_dim=8, num_cond=4 as in the module.  N=300 exercises the tiny
    # single-block / padded path; N=6000 exercises multi-block grid, ragged last
    # block and the in-kernel chunk loop.
    hidden_dim, num_cond = 8, 4
    key = jax.random.PRNGKey(0)
    kp, kd = jax.random.split(key)
    params = init_params(kp, num_cond, hidden_dim)

    for N in (300, 6000):
        kx, kc, kd = jax.random.split(kd, 3)
        x = jax.random.bernoulli(kx, 0.3, (N, 1)).astype(jnp.float32)  # binary mask
        cond = jax.random.normal(kc, (N, num_cond), jnp.float32)

        lossv = jax.block_until_ready(binary_mask_forward(x, cond, params))
        ref = binary_mask_forward_ref(x, cond, params)

        assert lossv.shape == (N,)
        assert bool(jnp.all(jnp.isfinite(lossv)))
        assert jnp.allclose(lossv, ref, rtol=1e-5, atol=1e-5), (N, lossv, ref)

    print("KERNEL_OK")
</pallas_src>

<mosaic_0001>
module attributes {stable_mosaic.version = 11 : i64} {
  func.func @_binary_mask_kernel(%arg0: i32, %arg1: memref<3x128xf32, #tpu.memory_space<vmem>>, %arg2: memref<4x3x128xf32, #tpu.memory_space<vmem>>, %arg3: memref<8x4xf32, #tpu.memory_space<smem>>, %arg4: memref<8xf32, #tpu.memory_space<smem>>, %arg5: memref<8x8xf32, #tpu.memory_space<smem>>, %arg6: memref<8xf32, #tpu.memory_space<smem>>, %arg7: memref<8xf32, #tpu.memory_space<smem>>, %arg8: memref<1xf32, #tpu.memory_space<smem>>, %arg9: memref<3x128xf32, #tpu.memory_space<vmem>>) attributes {dimension_semantics = [#tpu.dimension_semantics<parallel>], iteration_bounds = array<i64: 1>, scalar_prefetch = 0 : i64, scratch_operands = 0 : i64, tpu.core_type = #tpu.core_type<tc>, window_params = [{transform_indices = @transform_0, window_bounds = array<i64: 3, 128>}, {transform_indices = @transform_1, window_bounds = array<i64: 4, 3, 128>}, {transform_indices = @transform_2, window_bounds = array<i64: 8, 4>}, {transform_indices = @transform_3, window_bounds = array<i64: 8>}, {transform_indices = @transform_4, window_bounds = array<i64: 8, 8>}, {transform_indices = @transform_5, window_bounds = array<i64: 8>}, {transform_indices = @transform_6, window_bounds = array<i64: 8>}, {transform_indices = @transform_7, window_bounds = array<i64: 1>}, {transform_indices = @transform_8, window_bounds = array<i64: 3, 128>}]} {
    %c0 = arith.constant 0 : index
    %c0_0 = arith.constant 0 : index
    %0 = memref.load %arg3[%c0, %c0_0] : memref<8x4xf32, #tpu.memory_space<smem>>
    %c0_1 = arith.constant 0 : index
    %c1 = arith.constant 1 : index
    %1 = memref.load %arg3[%c0_1, %c1] : memref<8x4xf32, #tpu.memory_space<smem>>
    %c0_2 = arith.constant 0 : index
    %c2 = arith.constant 2 : index
    %2 = memref.load %arg3[%c0_2, %c2] : memref<8x4xf32, #tpu.memory_space<smem>>
    %c0_3 = arith.constant 0 : index
    %c3 = arith.constant 3 : index
    %3 = memref.load %arg3[%c0_3, %c3] : memref<8x4xf32, #tpu.memory_space<smem>>
    %c1_4 = arith.constant 1 : index
    %c0_5 = arith.constant 0 : index
    %4 = memref.load %arg3[%c1_4, %c0_5] : memref<8x4xf32, #tpu.memory_space<smem>>
    %c1_6 = arith.constant 1 : index
    %c1_7 = arith.constant 1 : index
    %5 = memref.load %arg3[%c1_6, %c1_7] : memref<8x4xf32, #tpu.memory_space<smem>>
    %c1_8 = arith.constant 1 : index
    %c2_9 = arith.constant 2 : index
    %6 = memref.load %arg3[%c1_8, %c2_9] : memref<8x4xf32, #tpu.memory_space<smem>>
    %c1_10 = arith.constant 1 : index
    %c3_11 = arith.constant 3 : index
    %7 = memref.load %arg3[%c1_10, %c3_11] : memref<8x4xf32, #tpu.memory_space<smem>>
    %c2_12 = arith.constant 2 : index
    %c0_13 = arith.constant 0 : index
    %8 = memref.load %arg3[%c2_12, %c0_13] : memref<8x4xf32, #tpu.memory_space<smem>>
    %c2_14 = arith.constant 2 : index
    %c1_15 = arith.constant 1 : index
    %9 = memref.load %arg3[%c2_14, %c1_15] : memref<8x4xf32, #tpu.memory_space<smem>>
    %c2_16 = arith.constant 2 : index
    %c2_17 = arith.constant 2 : index
    %10 = memref.load %arg3[%c2_16, %c2_17] : memref<8x4xf32, #tpu.memory_space<smem>>
    %c2_18 = arith.constant 2 : index
    %c3_19 = arith.constant 3 : index
    %11 = memref.load %arg3[%c2_18, %c3_19] : memref<8x4xf32, #tpu.memory_space<smem>>
    %c3_20 = arith.constant 3 : index
    %c0_21 = arith.constant 0 : index
    %12 = memref.load %arg3[%c3_20, %c0_21] : memref<8x4xf32, #tpu.memory_space<smem>>
    %c3_22 = arith.constant 3 : index
    %c1_23 = arith.constant 1 : index
    %13 = memref.load %arg3[%c3_22, %c1_23] : memref<8x4xf32, #tpu.memory_space<smem>>
    %c3_24 = arith.constant 3 : index
    %c2_25 = arith.constant 2 : index
    %14 = memref.load %arg3[%c3_24, %c2_25] : memref<8x4xf32, #tpu.memory_space<smem>>
    %c3_26 = arith.constant 3 : index
    %c3_27 = arith.constant 3 : index
    %15 = memref.load %arg3[%c3_26, %c3_27] : memref<8x4xf32, #tpu.memory_space<smem>>
    %c4 = arith.constant 4 : index
    %c0_28 = arith.constant 0 : index
    %16 = memref.load %arg3[%c4, %c0_28] : memref<8x4xf32, #tpu.memory_space<smem>>
    %c4_29 = arith.constant 4 : index
    %c1_30 = arith.constant 1 : index
    %17 = memref.load %arg3[%c4_29, %c1_30] : memref<8x4xf32, #tpu.memory_space<smem>>
    %c4_31 = arith.constant 4 : index
    %c2_32 = arith.constant 2 : index
    %18 = memref.load %arg3[%c4_31, %c2_32] : memref<8x4xf32, #tpu.memory_space<smem>>
    %c4_33 = arith.constant 4 : index
    %c3_34 = arith.constant 3 : index
    %19 = memref.load %arg3[%c4_33, %c3_34] : memref<8x4xf32, #tpu.memory_space<smem>>
    %c5 = arith.constant 5 : index
    %c0_35 = arith.constant 0 : index
    %20 = memref.load %arg3[%c5, %c0_35] : memref<8x4xf32, #tpu.memory_space<smem>>
    %c5_36 = arith.constant 5 : index
    %c1_37 = arith.constant 1 : index
    %21 = memref.load %arg3[%c5_36, %c1_37] : memref<8x4xf32, #tpu.memory_space<smem>>
    %c5_38 = arith.constant 5 : index
    %c2_39 = arith.constant 2 : index
    %22 = memref.load %arg3[%c5_38, %c2_39] : memref<8x4xf32, #tpu.memory_space<smem>>
    %c5_40 = arith.constant 5 : index
    %c3_41 = arith.constant 3 : index
    %23 = memref.load %arg3[%c5_40, %c3_41] : memref<8x4xf32, #tpu.memory_space<smem>>
    %c6 = arith.constant 6 : index
    %c0_42 = arith.constant 0 : index
    %24 = memref.load %arg3[%c6, %c0_42] : memref<8x4xf32, #tpu.memory_space<smem>>
    %c6_43 = arith.constant 6 : index
    %c1_44 = arith.constant 1 : index
    %25 = memref.load %arg3[%c6_43, %c1_44] : memref<8x4xf32, #tpu.memory_space<smem>>
    %c6_45 = arith.constant 6 : index
    %c2_46 = arith.constant 2 : index
    %26 = memref.load %arg3[%c6_45, %c2_46] : memref<8x4xf32, #tpu.memory_space<smem>>
    %c6_47 = arith.constant 6 : index
    %c3_48 = arith.constant 3 : index
    %27 = memref.load %arg3[%c6_47, %c3_48] : memref<8x4xf32, #tpu.memory_space<smem>>
    %c7 = arith.constant 7 : index
    %c0_49 = arith.constant 0 : index
    %28 = memref.load %arg3[%c7, %c0_49] : memref<8x4xf32, #tpu.memory_space<smem>>
    %c7_50 = arith.constant 7 : index
    %c1_51 = arith.constant 1 : index
    %29 = memref.load %arg3[%c7_50, %c1_51] : memref<8x4xf32, #tpu.memory_space<smem>>
    %c7_52 = arith.constant 7 : index
    %c2_53 = arith.constant 2 : index
    %30 = memref.load %arg3[%c7_52, %c2_53] : memref<8x4xf32, #tpu.memory_space<smem>>
    %c7_54 = arith.constant 7 : index
    %c3_55 = arith.constant 3 : index
    %31 = memref.load %arg3[%c7_54, %c3_55] : memref<8x4xf32, #tpu.memory_space<smem>>
    %c0_56 = arith.constant 0 : index
    %32 = memref.load %arg4[%c0_56] : memref<8xf32, #tpu.memory_space<smem>>
    %c1_57 = arith.constant 1 : index
    %33 = memref.load %arg4[%c1_57] : memref<8xf32, #tpu.memory_space<smem>>
    %c2_58 = arith.constant 2 : index
    %34 = memref.load %arg4[%c2_58] : memref<8xf32, #tpu.memory_space<smem>>
    %c3_59 = arith.constant 3 : index
    %35 = memref.load %arg4[%c3_59] : memref<8xf32, #tpu.memory_space<smem>>
    %c4_60 = arith.constant 4 : index
    %36 = memref.load %arg4[%c4_60] : memref<8xf32, #tpu.memory_space<smem>>
    %c5_61 = arith.constant 5 : index
    %37 = memref.load %arg4[%c5_61] : memref<8xf32, #tpu.memory_space<smem>>
    %c6_62 = arith.constant 6 : index
    %38 = memref.load %arg4[%c6_62] : memref<8xf32, #tpu.memory_space<smem>>
    %c7_63 = arith.constant 7 : index
    %39 = memref.load %arg4[%c7_63] : memref<8xf32, #tpu.memory_space<smem>>
    %c0_64 = arith.constant 0 : index
    %c0_65 = arith.constant 0 : index
    %40 = memref.load %arg5[%c0_64, %c0_65] : memref<8x8xf32, #tpu.memory_space<smem>>
    %c0_66 = arith.constant 0 : index
    %c1_67 = arith.constant 1 : index
    %41 = memref.load %arg5[%c0_66, %c1_67] : memref<8x8xf32, #tpu.memory_space<smem>>
    %c0_68 = arith.constant 0 : index
    %c2_69 = arith.constant 2 : index
    %42 = memref.load %arg5[%c0_68, %c2_69] : memref<8x8xf32, #tpu.memory_space<smem>>
    %c0_70 = arith.constant 0 : index
    %c3_71 = arith.constant 3 : index
    %43 = memref.load %arg5[%c0_70, %c3_71] : memref<8x8xf32, #tpu.memory_space<smem>>
    %c0_72 = arith.constant 0 : index
    %c4_73 = arith.constant 4 : index
    %44 = memref.load %arg5[%c0_72, %c4_73] : memref<8x8xf32, #tpu.memory_space<smem>>
    %c0_74 = arith.constant 0 : index
    %c5_75 = arith.constant 5 : index
    %45 = memref.load %arg5[%c0_74, %c5_75] : memref<8x8xf32, #tpu.memory_space<smem>>
    %c0_76 = arith.constant 0 : index
    %c6_77 = arith.constant 6 : index
    %46 = memref.load %arg5[%c0_76, %c6_77] : memref<8x8xf32, #tpu.memory_space<smem>>
    %c0_78 = arith.constant 0 : index
    %c7_79 = arith.constant 7 : index
    %47 = memref.load %arg5[%c0_78, %c7_79] : memref<8x8xf32, #tpu.memory_space<smem>>
    %c1_80 = arith.constant 1 : index
    %c0_81 = arith.constant 0 : index
    %48 = memref.load %arg5[%c1_80, %c0_81] : memref<8x8xf32, #tpu.memory_space<smem>>
    %c1_82 = arith.constant 1 : index
    %c1_83 = arith.constant 1 : index
    %49 = memref.load %arg5[%c1_82, %c1_83] : memref<8x8xf32, #tpu.memory_space<smem>>
    %c1_84 = arith.constant 1 : index
    %c2_85 = arith.constant 2 : index
    %50 = memref.load %arg5[%c1_84, %c2_85] : memref<8x8xf32, #tpu.memory_space<smem>>
    %c1_86 = arith.constant 1 : index
    %c3_87 = arith.constant 3 : index
    %51 = memref.load %arg5[%c1_86, %c3_87] : memref<8x8xf32, #tpu.memory_space<smem>>
    %c1_88 = arith.constant 1 : index
    %c4_89 = arith.constant 4 : index
    %52 = memref.load %arg5[%c1_88, %c4_89] : memref<8x8xf32, #tpu.memory_space<smem>>
    %c1_90 = arith.constant 1 : index
    %c5_91 = arith.constant 5 : index
    %53 = memref.load %arg5[%c1_90, %c5_91] : memref<8x8xf32, #tpu.memory_space<smem>>
    %c1_92 = arith.constant 1 : index
    %c6_93 = arith.constant 6 : index
    %54 = memref.load %arg5[%c1_92, %c6_93] : memref<8x8xf32, #tpu.memory_space<smem>>
    %c1_94 = arith.constant 1 : index
    %c7_95 = arith.constant 7 : index
    %55 = memref.load %arg5[%c1_94, %c7_95] : memref<8x8xf32, #tpu.memory_space<smem>>
    %c2_96 = arith.constant 2 : index
    %c0_97 = arith.constant 0 : index
    %56 = memref.load %arg5[%c2_96, %c0_97] : memref<8x8xf32, #tpu.memory_space<smem>>
    %c2_98 = arith.constant 2 : index
    %c1_99 = arith.constant 1 : index
    %57 = memref.load %arg5[%c2_98, %c1_99] : memref<8x8xf32, #tpu.memory_space<smem>>
    %c2_100 = arith.constant 2 : index
    %c2_101 = arith.constant 2 : index
    %58 = memref.load %arg5[%c2_100, %c2_101] : memref<8x8xf32, #tpu.memory_space<smem>>
    %c2_102 = arith.constant 2 : index
    %c3_103 = arith.constant 3 : index
    %59 = memref.load %arg5[%c2_102, %c3_103] : memref<8x8xf32, #tpu.memory_space<smem>>
    %c2_104 = arith.constant 2 : index
    %c4_105 = arith.constant 4 : index
    %60 = memref.load %arg5[%c2_104, %c4_105] : memref<8x8xf32, #tpu.memory_space<smem>>
    %c2_106 = arith.constant 2 : index
    %c5_107 = arith.constant 5 : index
    %61 = memref.load %arg5[%c2_106, %c5_107] : memref<8x8xf32, #tpu.memory_space<smem>>
    %c2_108 = arith.constant 2 : index
    %c6_109 = arith.constant 6 : index
    %62 = memref.load %arg5[%c2_108, %c6_109] : memref<8x8xf32, #tpu.memory_space<smem>>
    %c2_110 = arith.constant 2 : index
    %c7_111 = arith.constant 7 : index
    %63 = memref.load %arg5[%c2_110, %c7_111] : memref<8x8xf32, #tpu.memory_space<smem>>
    %c3_112 = arith.constant 3 : index
    %c0_113 = arith.constant 0 : index
    %64 = memref.load %arg5[%c3_112, %c0_113] : memref<8x8xf32, #tpu.memory_space<smem>>
    %c3_114 = arith.constant 3 : index
    %c1_115 = arith.constant 1 : index
    %65 = memref.load %arg5[%c3_114, %c1_115] : memref<8x8xf32, #tpu.memory_space<smem>>
    %c3_116 = arith.constant 3 : index
    %c2_117 = arith.constant 2 : index
    %66 = memref.load %arg5[%c3_116, %c2_117] : memref<8x8xf32, #tpu.memory_space<smem>>
    %c3_118 = arith.constant 3 : index
    %c3_119 = arith.constant 3 : index
    %67 = memref.load %arg5[%c3_118, %c3_119] : memref<8x8xf32, #tpu.memory_space<smem>>
    %c3_120 = arith.constant 3 : index
    %c4_121 = arith.constant 4 : index
    %68 = memref.load %arg5[%c3_120, %c4_121] : memref<8x8xf32, #tpu.memory_space<smem>>
    %c3_122 = arith.constant 3 : index
    %c5_123 = arith.constant 5 : index
    %69 = memref.load %arg5[%c3_122, %c5_123] : memref<8x8xf32, #tpu.memory_space<smem>>
    %c3_124 = arith.constant 3 : index
    %c6_125 = arith.constant 6 : index
    %70 = memref.load %arg5[%c3_124, %c6_125] : memref<8x8xf32, #tpu.memory_space<smem>>
    %c3_126 = arith.constant 3 : index
    %c7_127 = arith.constant 7 : index
    %71 = memref.load %arg5[%c3_126, %c7_127] : memref<8x8xf32, #tpu.memory_space<smem>>
    %c4_128 = arith.constant 4 : index
    %c0_129 = arith.constant 0 : index
    %72 = memref.load %arg5[%c4_128, %c0_129] : memref<8x8xf32, #tpu.memory_space<smem>>
    %c4_130 = arith.constant 4 : index
    %c1_131 = arith.constant 1 : index
    %73 = memref.load %arg5[%c4_130, %c1_131] : memref<8x8xf32, #tpu.memory_space<smem>>
    %c4_132 = arith.constant 4 : index
    %c2_133 = arith.constant 2 : index
    %74 = memref.load %arg5[%c4_132, %c2_133] : memref<8x8xf32, #tpu.memory_space<smem>>
    %c4_134 = arith.constant 4 : index
    %c3_135 = arith.constant 3 : index
    %75 = memref.load %arg5[%c4_134, %c3_135] : memref<8x8xf32, #tpu.memory_space<smem>>
    %c4_136 = arith.constant 4 : index
    %c4_137 = arith.constant 4 : index
    %76 = memref.load %arg5[%c4_136, %c4_137] : memref<8x8xf32, #tpu.memory_space<smem>>
    %c4_138 = arith.constant 4 : index
    %c5_139 = arith.constant 5 : index
    %77 = memref.load %arg5[%c4_138, %c5_139] : memref<8x8xf32, #tpu.memory_space<smem>>
    %c4_140 = arith.constant 4 : index
    %c6_141 = arith.constant 6 : index
    %78 = memref.load %arg5[%c4_140, %c6_141] : memref<8x8xf32, #tpu.memory_space<smem>>
    %c4_142 = arith.constant 4 : index
    %c7_143 = arith.constant 7 : index
    %79 = memref.load %arg5[%c4_142, %c7_143] : memref<8x8xf32, #tpu.memory_space<smem>>
    %c5_144 = arith.constant 5 : index
    %c0_145 = arith.constant 0 : index
    %80 = memref.load %arg5[%c5_144, %c0_145] : memref<8x8xf32, #tpu.memory_space<smem>>
    %c5_146 = arith.constant 5 : index
    %c1_147 = arith.constant 1 : index
    %81 = memref.load %arg5[%c5_146, %c1_147] : memref<8x8xf32, #tpu.memory_space<smem>>
    %c5_148 = arith.constant 5 : index
    %c2_149 = arith.constant 2 : index
    %82 = memref.load %arg5[%c5_148, %c2_149] : memref<8x8xf32, #tpu.memory_space<smem>>
    %c5_150 = arith.constant 5 : index
    %c3_151 = arith.constant 3 : index
    %83 = memref.load %arg5[%c5_150, %c3_151] : memref<8x8xf32, #tpu.memory_space<smem>>
    %c5_152 = arith.constant 5 : index
    %c4_153 = arith.constant 4 : index
    %84 = memref.load %arg5[%c5_152, %c4_153] : memref<8x8xf32, #tpu.memory_space<smem>>
    %c5_154 = arith.constant 5 : index
    %c5_155 = arith.constant 5 : index
    %85 = memref.load %arg5[%c5_154, %c5_155] : memref<8x8xf32, #tpu.memory_space<smem>>
    %c5_156 = arith.constant 5 : index
    %c6_157 = arith.constant 6 : index
    %86 = memref.load %arg5[%c5_156, %c6_157] : memref<8x8xf32, #tpu.memory_space<smem>>
    %c5_158 = arith.constant 5 : index
    %c7_159 = arith.constant 7 : index
    %87 = memref.load %arg5[%c5_158, %c7_159] : memref<8x8xf32, #tpu.memory_space<smem>>
    %c6_160 = arith.constant 6 : index
    %c0_161 = arith.constant 0 : index
    %88 = memref.load %arg5[%c6_160, %c0_161] : memref<8x8xf32, #tpu.memory_space<smem>>
    %c6_162 = arith.constant 6 : index
    %c1_163 = arith.constant 1 : index
    %89 = memref.load %arg5[%c6_162, %c1_163] : memref<8x8xf32, #tpu.memory_space<smem>>
    %c6_164 = arith.constant 6 : index
    %c2_165 = arith.constant 2 : index
    %90 = memref.load %arg5[%c6_164, %c2_165] : memref<8x8xf32, #tpu.memory_space<smem>>
    %c6_166 = arith.constant 6 : index
    %c3_167 = arith.constant 3 : index
    %91 = memref.load %arg5[%c6_166, %c3_167] : memref<8x8xf32, #tpu.memory_space<smem>>
    %c6_168 = arith.constant 6 : index
    %c4_169 = arith.constant 4 : index
    %92 = memref.load %arg5[%c6_168, %c4_169] : memref<8x8xf32, #tpu.memory_space<smem>>
    %c6_170 = arith.constant 6 : index
    %c5_171 = arith.constant 5 : index
    %93 = memref.load %arg5[%c6_170, %c5_171] : memref<8x8xf32, #tpu.memory_space<smem>>
    %c6_172 = arith.constant 6 : index
    %c6_173 = arith.constant 6 : index
    %94 = memref.load %arg5[%c6_172, %c6_173] : memref<8x8xf32, #tpu.memory_space<smem>>
    %c6_174 = arith.constant 6 : index
    %c7_175 = arith.constant 7 : index
    %95 = memref.load %arg5[%c6_174, %c7_175] : memref<8x8xf32, #tpu.memory_space<smem>>
    %c7_176 = arith.constant 7 : index
    %c0_177 = arith.constant 0 : index
    %96 = memref.load %arg5[%c7_176, %c0_177] : memref<8x8xf32, #tpu.memory_space<smem>>
    %c7_178 = arith.constant 7 : index
    %c1_179 = arith.constant 1 : index
    %97 = memref.load %arg5[%c7_178, %c1_179] : memref<8x8xf32, #tpu.memory_space<smem>>
    %c7_180 = arith.constant 7 : index
    %c2_181 = arith.constant 2 : index
    %98 = memref.load %arg5[%c7_180, %c2_181] : memref<8x8xf32, #tpu.memory_space<smem>>
    %c7_182 = arith.constant 7 : index
    %c3_183 = arith.constant 3 : index
    %99 = memref.load %arg5[%c7_182, %c3_183] : memref<8x8xf32, #tpu.memory_space<smem>>
    %c7_184 = arith.constant 7 : index
    %c4_185 = arith.constant 4 : index
    %100 = memref.load %arg5[%c7_184, %c4_185] : memref<8x8xf32, #tpu.memory_space<smem>>
    %c7_186 = arith.constant 7 : index
    %c5_187 = arith.constant 5 : index
    %101 = memref.load %arg5[%c7_186, %c5_187] : memref<8x8xf32, #tpu.memory_space<smem>>
    %c7_188 = arith.constant 7 : index
    %c6_189 = arith.constant 6 : index
    %102 = memref.load %arg5[%c7_188, %c6_189] : memref<8x8xf32, #tpu.memory_space<smem>>
    %c7_190 = arith.constant 7 : index
    %c7_191 = arith.constant 7 : index
    %103 = memref.load %arg5[%c7_190, %c7_191] : memref<8x8xf32, #tpu.memory_space<smem>>
    %c0_192 = arith.constant 0 : index
    %104 = memref.load %arg6[%c0_192] : memref<8xf32, #tpu.memory_space<smem>>
    %c1_193 = arith.constant 1 : index
    %105 = memref.load %arg6[%c1_193] : memref<8xf32, #tpu.memory_space<smem>>
    %c2_194 = arith.constant 2 : index
    %106 = memref.load %arg6[%c2_194] : memref<8xf32, #tpu.memory_space<smem>>
    %c3_195 = arith.constant 3 : index
    %107 = memref.load %arg6[%c3_195] : memref<8xf32, #tpu.memory_space<smem>>
    %c4_196 = arith.constant 4 : index
    %108 = memref.load %arg6[%c4_196] : memref<8xf32, #tpu.memory_space<smem>>
    %c5_197 = arith.constant 5 : index
    %109 = memref.load %arg6[%c5_197] : memref<8xf32, #tpu.memory_space<smem>>
    %c6_198 = arith.constant 6 : index
    %110 = memref.load %arg6[%c6_198] : memref<8xf32, #tpu.memory_space<smem>>
    %c7_199 = arith.constant 7 : index
    %111 = memref.load %arg6[%c7_199] : memref<8xf32, #tpu.memory_space<smem>>
    %c0_200 = arith.constant 0 : index
    %112 = memref.load %arg7[%c0_200] : memref<8xf32, #tpu.memory_space<smem>>
    %c1_201 = arith.constant 1 : index
    %113 = memref.load %arg7[%c1_201] : memref<8xf32, #tpu.memory_space<smem>>
    %c2_202 = arith.constant 2 : index
    %114 = memref.load %arg7[%c2_202] : memref<8xf32, #tpu.memory_space<smem>>
    %c3_203 = arith.constant 3 : index
    %115 = memref.load %arg7[%c3_203] : memref<8xf32, #tpu.memory_space<smem>>
    %c4_204 = arith.constant 4 : index
    %116 = memref.load %arg7[%c4_204] : memref<8xf32, #tpu.memory_space<smem>>
    %c5_205 = arith.constant 5 : index
    %117 = memref.load %arg7[%c5_205] : memref<8xf32, #tpu.memory_space<smem>>
    %c6_206 = arith.constant 6 : index
    %118 = memref.load %arg7[%c6_206] : memref<8xf32, #tpu.memory_space<smem>>
    %c7_207 = arith.constant 7 : index
    %119 = memref.load %arg7[%c7_207] : memref<8xf32, #tpu.memory_space<smem>>
    %c0_208 = arith.constant 0 : index
    %120 = memref.load %arg8[%c0_208] : memref<1xf32, #tpu.memory_space<smem>>
    %c0_i32 = arith.constant 0 : i32
    %c3_i32 = arith.constant 3 : i32
    %121 = arith.muli %c0_i32, %c3_i32 : i32
    %122 = tpu.assume_multiple %121, 3 : i32
    %c0_209 = arith.constant 0 : index
    %123 = arith.index_cast %122 : i32 to index
    %c0_210 = arith.constant 0 : index
    %124 = vector.load %arg2[%c0_209, %123, %c0_210] : memref<4x3x128xf32, #tpu.memory_space<vmem>>, vector<1x3x128xf32>
    %125 = vector.shape_cast %124 : vector<1x3x128xf32> to vector<3x128xf32>
    %c1_211 = arith.constant 1 : index
    %126 = arith.index_cast %122 : i32 to index
    %c0_212 = arith.constant 0 : index
    %127 = vector.load %arg2[%c1_211, %126, %c0_212] : memref<4x3x128xf32, #tpu.memory_space<vmem>>, vector<1x3x128xf32>
    %128 = vector.shape_cast %127 : vector<1x3x128xf32> to vector<3x128xf32>
    %c2_213 = arith.constant 2 : index
    %129 = arith.index_cast %122 : i32 to index
    %c0_214 = arith.constant 0 : index
    %130 = vector.load %arg2[%c2_213, %129, %c0_214] : memref<4x3x128xf32, #tpu.memory_space<vmem>>, vector<1x3x128xf32>
    %131 = vector.shape_cast %130 : vector<1x3x128xf32> to vector<3x128xf32>
    %c3_215 = arith.constant 3 : index
    %132 = arith.index_cast %122 : i32 to index
    %c0_216 = arith.constant 0 : index
    %133 = vector.load %arg2[%c3_215, %132, %c0_216] : memref<4x3x128xf32, #tpu.memory_space<vmem>>, vector<1x3x128xf32>
    %134 = vector.shape_cast %133 : vector<1x3x128xf32> to vector<3x128xf32>
    %135 = vector.broadcast %0 : f32 to vector<3x128xf32>
    %136 = arith.mulf %125, %135 : vector<3x128xf32>
    %137 = vector.broadcast %1 : f32 to vector<3x128xf32>
    %138 = arith.mulf %128, %137 : vector<3x128xf32>
    %139 = arith.addf %136, %138 : vector<3x128xf32>
    %140 = vector.broadcast %2 : f32 to vector<3x128xf32>
    %141 = arith.mulf %131, %140 : vector<3x128xf32>
    %142 = arith.addf %139, %141 : vector<3x128xf32>
    %143 = vector.broadcast %3 : f32 to vector<3x128xf32>
    %144 = arith.mulf %134, %143 : vector<3x128xf32>
    %145 = arith.addf %142, %144 : vector<3x128xf32>
    %146 = vector.broadcast %32 : f32 to vector<3x128xf32>
    %147 = arith.addf %145, %146 : vector<3x128xf32>
    %148 = math.tanh %147 : vector<3x128xf32>
    %149 = vector.broadcast %4 : f32 to vector<3x128xf32>
    %150 = arith.mulf %125, %149 : vector<3x128xf32>
    %151 = vector.broadcast %5 : f32 to vector<3x128xf32>
    %152 = arith.mulf %128, %151 : vector<3x128xf32>
    %153 = arith.addf %150, %152 : vector<3x128xf32>
    %154 = vector.broadcast %6 : f32 to vector<3x128xf32>
    %155 = arith.mulf %131, %154 : vector<3x128xf32>
    %156 = arith.addf %153, %155 : vector<3x128xf32>
    %157 = vector.broadcast %7 : f32 to vector<3x128xf32>
    %158 = arith.mulf %134, %157 : vector<3x128xf32>
    %159 = arith.addf %156, %158 : vector<3x128xf32>
    %160 = vector.broadcast %33 : f32 to vector<3x128xf32>
    %161 = arith.addf %159, %160 : vector<3x128xf32>
    %162 = math.tanh %161 : vector<3x128xf32>
    %163 = vector.broadcast %8 : f32 to vector<3x128xf32>
    %164 = arith.mulf %125, %163 : vector<3x128xf32>
    %165 = vector.broadcast %9 : f32 to vector<3x128xf32>
    %166 = arith.mulf %128, %165 : vector<3x128xf32>
    %167 = arith.addf %164, %166 : vector<3x128xf32>
    %168 = vector.broadcast %10 : f32 to vector<3x128xf32>
    %169 = arith.mulf %131, %168 : vector<3x128xf32>
    %170 = arith.addf %167, %169 : vector<3x128xf32>
    %171 = vector.broadcast %11 : f32 to vector<3x128xf32>
    %172 = arith.mulf %134, %171 : vector<3x128xf32>
    %173 = arith.addf %170, %172 : vector<3x128xf32>
    %174 = vector.broadcast %34 : f32 to vector<3x128xf32>
    %175 = arith.addf %173, %174 : vector<3x128xf32>
    %176 = math.tanh %175 : vector<3x128xf32>
    %177 = vector.broadcast %12 : f32 to vector<3x128xf32>
    %178 = arith.mulf %125, %177 : vector<3x128xf32>
    %179 = vector.broadcast %13 : f32 to vector<3x128xf32>
    %180 = arith.mulf %128, %179 : vector<3x128xf32>
    %181 = arith.addf %178, %180 : vector<3x128xf32>
    %182 = vector.broadcast %14 : f32 to vector<3x128xf32>
    %183 = arith.mulf %131, %182 : vector<3x128xf32>
    %184 = arith.addf %181, %183 : vector<3x128xf32>
    %185 = vector.broadcast %15 : f32 to vector<3x128xf32>
    %186 = arith.mulf %134, %185 : vector<3x128xf32>
    %187 = arith.addf %184, %186 : vector<3x128xf32>
    %188 = vector.broadcast %35 : f32 to vector<3x128xf32>
    %189 = arith.addf %187, %188 : vector<3x128xf32>
    %190 = math.tanh %189 : vector<3x128xf32>
    %191 = vector.broadcast %16 : f32 to vector<3x128xf32>
    %192 = arith.mulf %125, %191 : vector<3x128xf32>
    %193 = vector.broadcast %17 : f32 to vector<3x128xf32>
    %194 = arith.mulf %128, %193 : vector<3x128xf32>
    %195 = arith.addf %192, %194 : vector<3x128xf32>
    %196 = vector.broadcast %18 : f32 to vector<3x128xf32>
    %197 = arith.mulf %131, %196 : vector<3x128xf32>
    %198 = arith.addf %195, %197 : vector<3x128xf32>
    %199 = vector.broadcast %19 : f32 to vector<3x128xf32>
    %200 = arith.mulf %134, %199 : vector<3x128xf32>
    %201 = arith.addf %198, %200 : vector<3x128xf32>
    %202 = vector.broadcast %36 : f32 to vector<3x128xf32>
    %203 = arith.addf %201, %202 : vector<3x128xf32>
    %204 = math.tanh %203 : vector<3x128xf32>
    %205 = vector.broadcast %20 : f32 to vector<3x128xf32>
    %206 = arith.mulf %125, %205 : vector<3x128xf32>
    %207 = vector.broadcast %21 : f32 to vector<3x128xf32>
    %208 = arith.mulf %128, %207 : vector<3x128xf32>
    %209 = arith.addf %206, %208 : vector<3x128xf32>
    %210 = vector.broadcast %22 : f32 to vector<3x128xf32>
    %211 = arith.mulf %131, %210 : vector<3x128xf32>
    %212 = arith.addf %209, %211 : vector<3x128xf32>
    %213 = vector.broadcast %23 : f32 to vector<3x128xf32>
    %214 = arith.mulf %134, %213 : vector<3x128xf32>
    %215 = arith.addf %212, %214 : vector<3x128xf32>
    %216 = vector.broadcast %37 : f32 to vector<3x128xf32>
    %217 = arith.addf %215, %216 : vector<3x128xf32>
    %218 = math.tanh %217 : vector<3x128xf32>
    %219 = vector.broadcast %24 : f32 to vector<3x128xf32>
    %220 = arith.mulf %125, %219 : vector<3x128xf32>
    %221 = vector.broadcast %25 : f32 to vector<3x128xf32>
    %222 = arith.mulf %128, %221 : vector<3x128xf32>
    %223 = arith.addf %220, %222 : vector<3x128xf32>
    %224 = vector.broadcast %26 : f32 to vector<3x128xf32>
    %225 = arith.mulf %131, %224 : vector<3x128xf32>
    %226 = arith.addf %223, %225 : vector<3x128xf32>
    %227 = vector.broadcast %27 : f32 to vector<3x128xf32>
    %228 = arith.mulf %134, %227 : vector<3x128xf32>
    %229 = arith.addf %226, %228 : vector<3x128xf32>
    %230 = vector.broadcast %38 : f32 to vector<3x128xf32>
    %231 = arith.addf %229, %230 : vector<3x128xf32>
    %232 = math.tanh %231 : vector<3x128xf32>
    %233 = vector.broadcast %28 : f32 to vector<3x128xf32>
    %234 = arith.mulf %125, %233 : vector<3x128xf32>
    %235 = vector.broadcast %29 : f32 to vector<3x128xf32>
    %236 = arith.mulf %128, %235 : vector<3x128xf32>
    %237 = arith.addf %234, %236 : vector<3x128xf32>
    %238 = vector.broadcast %30 : f32 to vector<3x128xf32>
    %239 = arith.mulf %131, %238 : vector<3x128xf32>
    %240 = arith.addf %237, %239 : vector<3x128xf32>
    %241 = vector.broadcast %31 : f32 to vector<3x128xf32>
    %242 = arith.mulf %134, %241 : vector<3x128xf32>
    %243 = arith.addf %240, %242 : vector<3x128xf32>
    %244 = vector.broadcast %39 : f32 to vector<3x128xf32>
    %245 = arith.addf %243, %244 : vector<3x128xf32>
    %246 = math.tanh %245 : vector<3x128xf32>
    %247 = vector.broadcast %40 : f32 to vector<3x128xf32>
    %248 = arith.mulf %148, %247 : vector<3x128xf32>
    %249 = vector.broadcast %41 : f32 to vector<3x128xf32>
    %250 = arith.mulf %162, %249 : vector<3x128xf32>
    %251 = arith.addf %248, %250 : vector<3x128xf32>
    %252 = vector.broadcast %42 : f32 to vector<3x128xf32>
    %253 = arith.mulf %176, %252 : vector<3x128xf32>
    %254 = arith.addf %251, %253 : vector<3x128xf32>
    %255 = vector.broadcast %43 : f32 to vector<3x128xf32>
    %256 = arith.mulf %190, %255 : vector<3x128xf32>
    %257 = arith.addf %254, %256 : vector<3x128xf32>
    %258 = vector.broadcast %44 : f32 to vector<3x128xf32>
    %259 = arith.mulf %204, %258 : vector<3x128xf32>
    %260 = arith.addf %257, %259 : vector<3x128xf32>
    %261 = vector.broadcast %45 : f32 to vector<3x128xf32>
    %262 = arith.mulf %218, %261 : vector<3x128xf32>
    %263 = arith.addf %260, %262 : vector<3x128xf32>
    %264 = vector.broadcast %46 : f32 to vector<3x128xf32>
    %265 = arith.mulf %232, %264 : vector<3x128xf32>
    %266 = arith.addf %263, %265 : vector<3x128xf32>
    %267 = vector.broadcast %47 : f32 to vector<3x128xf32>
    %268 = arith.mulf %246, %267 : vector<3x128xf32>
    %269 = arith.addf %266, %268 : vector<3x128xf32>
    %270 = vector.broadcast %104 : f32 to vector<3x128xf32>
    %271 = arith.addf %269, %270 : vector<3x128xf32>
    %272 = math.tanh %271 : vector<3x128xf32>
    %273 = vector.broadcast %112 : f32 to vector<3x128xf32>
    %274 = arith.mulf %272, %273 : vector<3x128xf32>
    %275 = vector.broadcast %48 : f32 to vector<3x128xf32>
    %276 = arith.mulf %148, %275 : vector<3x128xf32>
    %277 = vector.broadcast %49 : f32 to vector<3x128xf32>
    %278 = arith.mulf %162, %277 : vector<3x128xf32>
    %279 = arith.addf %276, %278 : vector<3x128xf32>
    %280 = vector.broadcast %50 : f32 to vector<3x128xf32>
    %281 = arith.mulf %176, %280 : vector<3x128xf32>
    %282 = arith.addf %279, %281 : vector<3x128xf32>
    %283 = vector.broadcast %51 : f32 to vector<3x128xf32>
    %284 = arith.mulf %190, %283 : vector<3x128xf32>
    %285 = arith.addf %282, %284 : vector<3x128xf32>
    %286 = vector.broadcast %52 : f32 to vector<3x128xf32>
    %287 = arith.mulf %204, %286 : vector<3x128xf32>
    %288 = arith.addf %285, %287 : vector<3x128xf32>
    %289 = vector.broadcast %53 : f32 to vector<3x128xf32>
    %290 = arith.mulf %218, %289 : vector<3x128xf32>
    %291 = arith.addf %288, %290 : vector<3x128xf32>
    %292 = vector.broadcast %54 : f32 to vector<3x128xf32>
    %293 = arith.mulf %232, %292 : vector<3x128xf32>
    %294 = arith.addf %291, %293 : vector<3x128xf32>
    %295 = vector.broadcast %55 : f32 to vector<3x128xf32>
    %296 = arith.mulf %246, %295 : vector<3x128xf32>
    %297 = arith.addf %294, %296 : vector<3x128xf32>
    %298 = vector.broadcast %105 : f32 to vector<3x128xf32>
    %299 = arith.addf %297, %298 : vector<3x128xf32>
    %300 = math.tanh %299 : vector<3x128xf32>
    %301 = vector.broadcast %113 : f32 to vector<3x128xf32>
    %302 = arith.mulf %300, %301 : vector<3x128xf32>
    %303 = arith.addf %274, %302 : vector<3x128xf32>
    %304 = vector.broadcast %56 : f32 to vector<3x128xf32>
    %305 = arith.mulf %148, %304 : vector<3x128xf32>
    %306 = vector.broadcast %57 : f32 to vector<3x128xf32>
    %307 = arith.mulf %162, %306 : vector<3x128xf32>
    %308 = arith.addf %305, %307 : vector<3x128xf32>
    %309 = vector.broadcast %58 : f32 to vector<3x128xf32>
    %310 = arith.mulf %176, %309 : vector<3x128xf32>
    %311 = arith.addf %308, %310 : vector<3x128xf32>
    %312 = vector.broadcast %59 : f32 to vector<3x128xf32>
    %313 = arith.mulf %190, %312 : vector<3x128xf32>
    %314 = arith.addf %311, %313 : vector<3x128xf32>
    %315 = vector.broadcast %60 : f32 to vector<3x128xf32>
    %316 = arith.mulf %204, %315 : vector<3x128xf32>
    %317 = arith.addf %314, %316 : vector<3x128xf32>
    %318 = vector.broadcast %61 : f32 to vector<3x128xf32>
    %319 = arith.mulf %218, %318 : vector<3x128xf32>
    %320 = arith.addf %317, %319 : vector<3x128xf32>
    %321 = vector.broadcast %62 : f32 to vector<3x128xf32>
    %322 = arith.mulf %232, %321 : vector<3x128xf32>
    %323 = arith.addf %320, %322 : vector<3x128xf32>
    %324 = vector.broadcast %63 : f32 to vector<3x128xf32>
    %325 = arith.mulf %246, %324 : vector<3x128xf32>
    %326 = arith.addf %323, %325 : vector<3x128xf32>
    %327 = vector.broadcast %106 : f32 to vector<3x128xf32>
    %328 = arith.addf %326, %327 : vector<3x128xf32>
    %329 = math.tanh %328 : vector<3x128xf32>
    %330 = vector.broadcast %114 : f32 to vector<3x128xf32>
    %331 = arith.mulf %329, %330 : vector<3x128xf32>
    %332 = arith.addf %303, %331 : vector<3x128xf32>
    %333 = vector.broadcast %64 : f32 to vector<3x128xf32>
    %334 = arith.mulf %148, %333 : vector<3x128xf32>
    %335 = vector.broadcast %65 : f32 to vector<3x128xf32>
    %336 = arith.mulf %162, %335 : vector<3x128xf32>
    %337 = arith.addf %334, %336 : vector<3x128xf32>
    %338 = vector.broadcast %66 : f32 to vector<3x128xf32>
    %339 = arith.mulf %176, %338 : vector<3x128xf32>
    %340 = arith.addf %337, %339 : vector<3x128xf32>
    %341 = vector.broadcast %67 : f32 to vector<3x128xf32>
    %342 = arith.mulf %190, %341 : vector<3x128xf32>
    %343 = arith.addf %340, %342 : vector<3x128xf32>
    %344 = vector.broadcast %68 : f32 to vector<3x128xf32>
    %345 = arith.mulf %204, %344 : vector<3x128xf32>
    %346 = arith.addf %343, %345 : vector<3x128xf32>
    %347 = vector.broadcast %69 : f32 to vector<3x128xf32>
    %348 = arith.mulf %218, %347 : vector<3x128xf32>
    %349 = arith.addf %346, %348 : vector<3x128xf32>
    %350 = vector.broadcast %70 : f32 to vector<3x128xf32>
    %351 = arith.mulf %232, %350 : vector<3x128xf32>
    %352 = arith.addf %349, %351 : vector<3x128xf32>
    %353 = vector.broadcast %71 : f32 to vector<3x128xf32>
    %354 = arith.mulf %246, %353 : vector<3x128xf32>
    %355 = arith.addf %352, %354 : vector<3x128xf32>
    %356 = vector.broadcast %107 : f32 to vector<3x128xf32>
    %357 = arith.addf %355, %356 : vector<3x128xf32>
    %358 = math.tanh %357 : vector<3x128xf32>
    %359 = vector.broadcast %115 : f32 to vector<3x128xf32>
    %360 = arith.mulf %358, %359 : vector<3x128xf32>
    %361 = arith.addf %332, %360 : vector<3x128xf32>
    %362 = vector.broadcast %72 : f32 to vector<3x128xf32>
    %363 = arith.mulf %148, %362 : vector<3x128xf32>
    %364 = vector.broadcast %73 : f32 to vector<3x128xf32>
    %365 = arith.mulf %162, %364 : vector<3x128xf32>
    %366 = arith.addf %363, %365 : vector<3x128xf32>
    %367 = vector.broadcast %74 : f32 to vector<3x128xf32>
    %368 = arith.mulf %176, %367 : vector<3x128xf32>
    %369 = arith.addf %366, %368 : vector<3x128xf32>
    %370 = vector.broadcast %75 : f32 to vector<3x128xf32>
    %371 = arith.mulf %190, %370 : vector<3x128xf32>
    %372 = arith.addf %369, %371 : vector<3x128xf32>
    %373 = vector.broadcast %76 : f32 to vector<3x128xf32>
    %374 = arith.mulf %204, %373 : vector<3x128xf32>
    %375 = arith.addf %372, %374 : vector<3x128xf32>
    %376 = vector.broadcast %77 : f32 to vector<3x128xf32>
    %377 = arith.mulf %218, %376 : vector<3x128xf32>
    %378 = arith.addf %375, %377 : vector<3x128xf32>
    %379 = vector.broadcast %78 : f32 to vector<3x128xf32>
    %380 = arith.mulf %232, %379 : vector<3x128xf32>
    %381 = arith.addf %378, %380 : vector<3x128xf32>
    %382 = vector.broadcast %79 : f32 to vector<3x128xf32>
    %383 = arith.mulf %246, %382 : vector<3x128xf32>
    %384 = arith.addf %381, %383 : vector<3x128xf32>
    %385 = vector.broadcast %108 : f32 to vector<3x128xf32>
    %386 = arith.addf %384, %385 : vector<3x128xf32>
    %387 = math.tanh %386 : vector<3x128xf32>
    %388 = vector.broadcast %116 : f32 to vector<3x128xf32>
    %389 = arith.mulf %387, %388 : vector<3x128xf32>
    %390 = arith.addf %361, %389 : vector<3x128xf32>
    %391 = vector.broadcast %80 : f32 to vector<3x128xf32>
    %392 = arith.mulf %148, %391 : vector<3x128xf32>
    %393 = vector.broadcast %81 : f32 to vector<3x128xf32>
    %394 = arith.mulf %162, %393 : vector<3x128xf32>
    %395 = arith.addf %392, %394 : vector<3x128xf32>
    %396 = vector.broadcast %82 : f32 to vector<3x128xf32>
    %397 = arith.mulf %176, %396 : vector<3x128xf32>
    %398 = arith.addf %395, %397 : vector<3x128xf32>
    %399 = vector.broadcast %83 : f32 to vector<3x128xf32>
    %400 = arith.mulf %190, %399 : vector<3x128xf32>
    %401 = arith.addf %398, %400 : vector<3x128xf32>
    %402 = vector.broadcast %84 : f32 to vector<3x128xf32>
    %403 = arith.mulf %204, %402 : vector<3x128xf32>
    %404 = arith.addf %401, %403 : vector<3x128xf32>
    %405 = vector.broadcast %85 : f32 to vector<3x128xf32>
    %406 = arith.mulf %218, %405 : vector<3x128xf32>
    %407 = arith.addf %404, %406 : vector<3x128xf32>
    %408 = vector.broadcast %86 : f32 to vector<3x128xf32>
    %409 = arith.mulf %232, %408 : vector<3x128xf32>
    %410 = arith.addf %407, %409 : vector<3x128xf32>
    %411 = vector.broadcast %87 : f32 to vector<3x128xf32>
    %412 = arith.mulf %246, %411 : vector<3x128xf32>
    %413 = arith.addf %410, %412 : vector<3x128xf32>
    %414 = vector.broadcast %109 : f32 to vector<3x128xf32>
    %415 = arith.addf %413, %414 : vector<3x128xf32>
    %416 = math.tanh %415 : vector<3x128xf32>
    %417 = vector.broadcast %117 : f32 to vector<3x128xf32>
    %418 = arith.mulf %416, %417 : vector<3x128xf32>
    %419 = arith.addf %390, %418 : vector<3x128xf32>
    %420 = vector.broadcast %88 : f32 to vector<3x128xf32>
    %421 = arith.mulf %148, %420 : vector<3x128xf32>
    %422 = vector.broadcast %89 : f32 to vector<3x128xf32>
    %423 = arith.mulf %162, %422 : vector<3x128xf32>
    %424 = arith.addf %421, %423 : vector<3x128xf32>
    %425 = vector.broadcast %90 : f32 to vector<3x128xf32>
    %426 = arith.mulf %176, %425 : vector<3x128xf32>
    %427 = arith.addf %424, %426 : vector<3x128xf32>
    %428 = vector.broadcast %91 : f32 to vector<3x128xf32>
    %429 = arith.mulf %190, %428 : vector<3x128xf32>
    %430 = arith.addf %427, %429 : vector<3x128xf32>
    %431 = vector.broadcast %92 : f32 to vector<3x128xf32>
    %432 = arith.mulf %204, %431 : vector<3x128xf32>
    %433 = arith.addf %430, %432 : vector<3x128xf32>
    %434 = vector.broadcast %93 : f32 to vector<3x128xf32>
    %435 = arith.mulf %218, %434 : vector<3x128xf32>
    %436 = arith.addf %433, %435 : vector<3x128xf32>
    %437 = vector.broadcast %94 : f32 to vector<3x128xf32>
    %438 = arith.mulf %232, %437 : vector<3x128xf32>
    %439 = arith.addf %436, %438 : vector<3x128xf32>
    %440 = vector.broadcast %95 : f32 to vector<3x128xf32>
    %441 = arith.mulf %246, %440 : vector<3x128xf32>
    %442 = arith.addf %439, %441 : vector<3x128xf32>
    %443 = vector.broadcast %110 : f32 to vector<3x128xf32>
    %444 = arith.addf %442, %443 : vector<3x128xf32>
    %445 = math.tanh %444 : vector<3x128xf32>
    %446 = vector.broadcast %118 : f32 to vector<3x128xf32>
    %447 = arith.mulf %445, %446 : vector<3x128xf32>
    %448 = arith.addf %419, %447 : vector<3x128xf32>
    %449 = vector.broadcast %96 : f32 to vector<3x128xf32>
    %450 = arith.mulf %148, %449 : vector<3x128xf32>
    %451 = vector.broadcast %97 : f32 to vector<3x128xf32>
    %452 = arith.mulf %162, %451 : vector<3x128xf32>
    %453 = arith.addf %450, %452 : vector<3x128xf32>
    %454 = vector.broadcast %98 : f32 to vector<3x128xf32>
    %455 = arith.mulf %176, %454 : vector<3x128xf32>
    %456 = arith.addf %453, %455 : vector<3x128xf32>
    %457 = vector.broadcast %99 : f32 to vector<3x128xf32>
    %458 = arith.mulf %190, %457 : vector<3x128xf32>
    %459 = arith.addf %456, %458 : vector<3x128xf32>
    %460 = vector.broadcast %100 : f32 to vector<3x128xf32>
    %461 = arith.mulf %204, %460 : vector<3x128xf32>
    %462 = arith.addf %459, %461 : vector<3x128xf32>
    %463 = vector.broadcast %101 : f32 to vector<3x128xf32>
    %464 = arith.mulf %218, %463 : vector<3x128xf32>
    %465 = arith.addf %462, %464 : vector<3x128xf32>
    %466 = vector.broadcast %102 : f32 to vector<3x128xf32>
    %467 = arith.mulf %232, %466 : vector<3x128xf32>
    %468 = arith.addf %465, %467 : vector<3x128xf32>
    %469 = vector.broadcast %103 : f32 to vector<3x128xf32>
    %470 = arith.mulf %246, %469 : vector<3x128xf32>
    %471 = arith.addf %468, %470 : vector<3x128xf32>
    %472 = vector.broadcast %111 : f32 to vector<3x128xf32>
    %473 = arith.addf %471, %472 : vector<3x128xf32>
    %474 = math.tanh %473 : vector<3x128xf32>
    %475 = vector.broadcast %119 : f32 to vector<3x128xf32>
    %476 = arith.mulf %474, %475 : vector<3x128xf32>
    %477 = arith.addf %448, %476 : vector<3x128xf32>
    %478 = vector.broadcast %120 : f32 to vector<3x128xf32>
    %479 = arith.addf %477, %478 : vector<3x128xf32>
    %480 = arith.index_cast %122 : i32 to index
    %c0_217 = arith.constant 0 : index
    %481 = vector.load %arg1[%480, %c0_217] : memref<3x128xf32, #tpu.memory_space<vmem>>, vector<3x128xf32>
    %cst = arith.constant 0.000000e+00 : f32
    %482 = vector.broadcast %cst : f32 to vector<3x128xf32>
    %483 = arith.maximumf %479, %482 : vector<3x128xf32>
    %484 = arith.mulf %479, %481 : vector<3x128xf32>
    %485 = arith.subf %483, %484 : vector<3x128xf32>
    %486 = math.absf %479 : vector<3x128xf32>
    %cst_218 = arith.constant 0.000000e+00 : f32
    %487 = vector.broadcast %cst_218 : f32 to vector<3x128xf32>
    %488 = arith.subf %487, %486 : vector<3x128xf32>
    %489 = math.exp %488 : vector<3x128xf32>
    %cst_219 = arith.constant 1.000000e+00 : f32
    %490 = vector.broadcast %cst_219 : f32 to vector<3x128xf32>
    %491 = arith.addf %490, %489 : vector<3x128xf32>
    %492 = math.log %491 : vector<3x128xf32>
    %493 = arith.addf %485, %492 : vector<3x128xf32>
    %494 = arith.index_cast %122 : i32 to index
    %c0_220 = arith.constant 0 : index
    %495 = vector.load %arg9[%494, %c0_220] : memref<3x128xf32, #tpu.memory_space<vmem>>, vector<3x128xf32>
    tpu.vector_store %arg9[%494, %c0_220], %493 {strides = array<i32>} : memref<3x128xf32, #tpu.memory_space<vmem>>, vector<3x128xf32>,
    %c1_i32 = arith.constant 1 : i32
    return
  }
  func.func @transform_0(%arg0: i32) -> (i32, i32) {
    %c0_i32 = arith.constant 0 : i32
    %c0_i32_0 = arith.constant 0 : i32
    return %arg0, %c0_i32 : i32, i32
  }
  func.func @transform_1(%arg0: i32) -> (i32, i32, i32) {
    %c0_i32 = arith.constant 0 : i32
    %c0_i32_0 = arith.constant 0 : i32
    %c0_i32_1 = arith.constant 0 : i32
    return %c0_i32, %arg0, %c0_i32_0 : i32, i32, i32
  }
  func.func @transform_2(%arg0: i32) -> (i32, i32) {
    %c0_i32 = arith.constant 0 : i32
    %c0_i32_0 = arith.constant 0 : i32
    %c0_i32_1 = arith.constant 0 : i32
    return %c0_i32, %c0_i32_0 : i32, i32
  }
  func.func @transform_3(%arg0: i32) -> i32 {
    %c0_i32 = arith.constant 0 : i32
    %c0_i32_0 = arith.constant 0 : i32
    return %c0_i32 : i32
  }
  func.func @transform_4(%arg0: i32) -> (i32, i32) {
    %c0_i32 = arith.constant 0 : i32
    %c0_i32_0 = arith.constant 0 : i32
    %c0_i32_1 = arith.constant 0 : i32
    return %c0_i32, %c0_i32_0 : i32, i32
  }
  func.func @transform_5(%arg0: i32) -> i32 {
    %c0_i32 = arith.constant 0 : i32
    %c0_i32_0 = arith.constant 0 : i32
    return %c0_i32 : i32
  }
  func.func @transform_6(%arg0: i32) -> i32 {
    %c0_i32 = arith.constant 0 : i32
    %c0_i32_0 = arith.constant 0 : i32
    return %c0_i32 : i32
  }
  func.func @transform_7(%arg0: i32) -> i32 {
    %c0_i32 = arith.constant 0 : i32
    %c0_i32_0 = arith.constant 0 : i32
    return %c0_i32 : i32
  }
  func.func @transform_8(%arg0: i32) -> (i32, i32) {
    %c0_i32 = arith.constant 0 : i32
    %c0_i32_0 = arith.constant 0 : i32
    return %arg0, %c0_i32 : i32, i32
  }
}

</mosaic_0001>

<llo_original>
// kernel: tpu_custom_call.1
$region0: #{tpu_custom_call.1}
  #allocation0 [shape = 'u32[]', space=smem, size = 0x4, offset = 0x4, fixed_abs, tag = 'smem constant byte address 0x4 - core index']
  #allocation1 [shape = 'u32[72,128]{1,0:T(1,128)}', space=vmem, size = 0x9000, scoped, tag = 'internal scratch']
  #allocation2 [shape = 'f32[1]{0:T(128)S(6)}', space=smem, size = 0x200, scoped, tag = 'scoped memory for tpu_custom_call.1']
  %s0 = inlined_call_operand.vmem [shape: f32[3,128], index: 0, kind: input, shape index: {}]
  %s1 = inlined_call_operand.vmem [shape: f32[4,3,128], index: 1, kind: input, shape index: {}]
  %s2 = inlined_call_operand.vmem [shape: f32[8,4], index: 2, kind: input, shape index: {}]
  %s3 = inlined_call_operand.vmem [shape: f32[8], index: 3, kind: input, shape index: {}]
  %s4 = inlined_call_operand.vmem [shape: f32[8,8], index: 4, kind: input, shape index: {}]
  %s5 = inlined_call_operand.vmem [shape: f32[8], index: 5, kind: input, shape index: {}]
  %s6 = inlined_call_operand.vmem [shape: f32[8], index: 6, kind: input, shape index: {}]
  %s7 = inlined_call_operand.<no memory space> [shape: f32[1], index: 7, kind: input, shape index: {}]
  %s8 = inlined_call_operand.hbm [shape: f32[3,128], index: 8, kind: output, shape index: {}]
  %s9 = sld [smem:[#allocation0]]
  $region62: #{tpu_custom_call.1} parent=0
    _
  %s11 = ssub.s32 1, %s9
  %s12 = scalar_select 0, %s11, %s9
  %13 = sst [smem:[#allocation2]] %s7
  $region1: #{tpu_custom_call.1} parent=0
    #allocation3 [shape = 'u8[4096]{0}', space=smem, size = 0x1000, scoped, tag = 'input window, operand 2, single buffered']
    #allocation4 [shape = 's32[1]{0}', space=sflag, size = 0x4, scoped, tag = 'scoped memory for tpu_custom_call.1']
    #allocation5 [shape = 's32[1]{0}', space=sflag, size = 0x4, scoped, tag = 'scoped memory for tpu_custom_call.1']
    #allocation6 [shape = 'u8[512]{0}', space=smem, size = 0x200, scoped, tag = 'input window, operand 3, single buffered']
    #allocation7 [shape = 's32[1]{0}', space=sflag, size = 0x4, scoped, tag = 'scoped memory for tpu_custom_call.1']
    #allocation8 [shape = 'u8[4096]{0}', space=smem, size = 0x1000, scoped, tag = 'input window, operand 4, single buffered']
    #allocation9 [shape = 'u8[512]{0}', space=smem, size = 0x200, scoped, tag = 'input window, operand 5, single buffered']
    #allocation10 [shape = 's32[1]{0}', space=sflag, size = 0x4, scoped, tag = 'scoped memory for tpu_custom_call.1']
    #allocation11 [shape = 'u8[512]{0}', space=smem, size = 0x200, scoped, tag = 'input window, operand 6, single buffered']
    #allocation12 [shape = 'u8[2048]{0}', space=vmem, size = 0x800, scoped, tag = 'output window, operand 0, single buffered']
    %14 = vsyncpa [#allocation5], 0
    %15 = vsyncpa [#allocation7], 0
    %16 = vsyncpa [#allocation10], 0
    %17 = vsyncpa [#allocation4], 0
    // Predicated region
    $region2: #{tpu_custom_call.1} parent=1 // pred_check
      _
    $region3: #{tpu_custom_call.1} parent=1 // pred_check_branch
      %19 = sbr.rel (0) target = $region5
    $region4: #{tpu_custom_call.1} parent=1 // pred_region
      _
    $region5: #{tpu_custom_call.1} parent=1 // pred_fallthru
      _
    // Predicated region
    $region6: #{tpu_custom_call.1} parent=1 // pred_check
      _
    $region7: #{tpu_custom_call.1} parent=1 // pred_check_branch
      %21 = sbr.rel (0) target = $region9
    $region8: #{tpu_custom_call.1} parent=1 // pred_region
      _
    $region9: #{tpu_custom_call.1} parent=1 // pred_fallthru
      _
    // Predicated region
    $region10: #{tpu_custom_call.1} parent=1 // pred_check
      _
    $region11: #{tpu_custom_call.1} parent=1 // pred_check_branch
      %23 = sbr.rel (0) target = $region13
    $region12: #{tpu_custom_call.1} parent=1 // pred_region
      %25 = vsyncadd [#allocation5], 0
      %s27 = sshll.u32 %s2, 4
      %s28 = int_to_ptr.vmem [resolvable:$true] %s27
      %30 = dma.vmem_to_smem %s28, 128, [#allocation3], [#allocation5]
    $region13: #{tpu_custom_call.1} parent=1 // pred_fallthru
      _
    // Predicated region
    $region14: #{tpu_custom_call.1} parent=1 // pred_check
      _
    $region15: #{tpu_custom_call.1} parent=1 // pred_check_branch
      %32 = sbr.rel (0) target = $region17
    $region16: #{tpu_custom_call.1} parent=1 // pred_region
      %34 = vsyncadd [#allocation7], 0
      %s36 = sshll.u32 %s3, 4
      %s37 = int_to_ptr.vmem [resolvable:$true] %s36
      %39 = dma.vmem_to_smem %s37, 16, [#allocation6], [#allocation7]
    $region17: #{tpu_custom_call.1} parent=1 // pred_fallthru
      _
    // Predicated region
    $region18: #{tpu_custom_call.1} parent=1 // pred_check
      _
    $region19: #{tpu_custom_call.1} parent=1 // pred_check_branch
      %41 = sbr.rel (0) target = $region21
    $region20: #{tpu_custom_call.1} parent=1 // pred_region
      %43 = vsyncadd [#allocation7], 0
      %s45 = sshll.u32 %s4, 4
      %s46 = int_to_ptr.vmem [resolvable:$true] %s45
      %48 = dma.vmem_to_smem %s46, 128, [#allocation8], [#allocation7]
    $region21: #{tpu_custom_call.1} parent=1 // pred_fallthru
      _
    // Predicated region
    $region22: #{tpu_custom_call.1} parent=1 // pred_check
      _
    $region23: #{tpu_custom_call.1} parent=1 // pred_check_branch
      %50 = sbr.rel (0) target = $region25
    $region24: #{tpu_custom_call.1} parent=1 // pred_region
      %52 = vsyncadd [#allocation10], 0
      %s54 = sshll.u32 %s5, 4
      %s55 = int_to_ptr.vmem [resolvable:$true] %s54
      %57 = dma.vmem_to_smem %s55, 16, [#allocation9], [#allocation10]
    $region25: #{tpu_custom_call.1} parent=1 // pred_fallthru
      _
    // Predicated region
    $region26: #{tpu_custom_call.1} parent=1 // pred_check
      _
    $region27: #{tpu_custom_call.1} parent=1 // pred_check_branch
      %59 = sbr.rel (0) target = $region29
    $region28: #{tpu_custom_call.1} parent=1 // pred_region
      %61 = vsyncadd [#allocation10], 0
      %s63 = sshll.u32 %s6, 4
      %s64 = int_to_ptr.vmem [resolvable:$true] %s63
      %66 = dma.vmem_to_smem %s64, 16, [#allocation11], [#allocation10]
    $region29: #{tpu_custom_call.1} parent=1 // pred_fallthru
      _
    // Predicated region
    $region30: #{tpu_custom_call.1} parent=1 // pred_check
      _
    $region31: #{tpu_custom_call.1} parent=1 // pred_check_branch
      %68 = sbr.rel (0) target = $region33
    $region32: #{tpu_custom_call.1} parent=1 // pred_region
      _
    $region33: #{tpu_custom_call.1} parent=1 // pred_fallthru
      _
    // Predicated region
    $region34: #{tpu_custom_call.1} parent=1 // pred_check
      _
    $region35: #{tpu_custom_call.1} parent=1 // pred_check_branch
      %70 = sbr.rel (0) target = $region37
    $region36: #{tpu_custom_call.1} parent=1 // pred_region
      %72 = dma.done [#allocation5], 128
    $region37: #{tpu_custom_call.1} parent=1 // pred_fallthru
      _
    // Predicated region
    $region38: #{tpu_custom_call.1} parent=1 // pred_check
      _
    $region39: #{tpu_custom_call.1} parent=1 // pred_check_branch
      %74 = sbr.rel (0) target = $region41
    $region40: #{tpu_custom_call.1} parent=1 // pred_region
      %76 = dma.done [#allocation7], 16
    $region41: #{tpu_custom_call.1} parent=1 // pred_fallthru
      _
    // Predicated region
    $region42: #{tpu_custom_call.1} parent=1 // pred_check
      _
    $region43: #{tpu_custom_call.1} parent=1 // pred_check_branch
      %78 = sbr.rel (0) target = $region45
    $region44: #{tpu_custom_call.1} parent=1 // pred_region
      %80 = dma.done [#allocation7], 128
    $region45: #{tpu_custom_call.1} parent=1 // pred_fallthru
      _
    // Predicated region
    $region46: #{tpu_custom_call.1} parent=1 // pred_check
      _
    $region47: #{tpu_custom_call.1} parent=1 // pred_check_branch
      %82 = sbr.rel (0) target = $region49
    $region48: #{tpu_custom_call.1} parent=1 // pred_region
      %84 = dma.done [#allocation10], 16
    $region49: #{tpu_custom_call.1} parent=1 // pred_fallthru
      _
    // Predicated region
    $region50: #{tpu_custom_call.1} parent=1 // pred_check
      _
    $region51: #{tpu_custom_call.1} parent=1 // pred_check_branch
      %86 = sbr.rel (0) target = $region53
    $region52: #{tpu_custom_call.1} parent=1 // pred_region
      %88 = dma.done [#allocation10], 16
    $region53: #{tpu_custom_call.1} parent=1 // pred_fallthru
      _
    %89 = sfence
    %s90 = sld [smem:[#allocation3]]
    %s91 = sld [smem:[#allocation3 + $0x1]]
    %s92 = sld [smem:[#allocation3 + $0x2]]
    %s93 = sld [smem:[#allocation3 + $0x3]]
    %s94 = sld [smem:[#allocation3 + $0x80]]
    %s95 = sld [smem:[#allocation3 + $0x81]]
    %s96 = sld [smem:[#allocation3 + $0x82]]
    %s97 = sld [smem:[#allocation3 + $0x83]]
    %s98 = sld [smem:[#allocation3 + $0x100]]
    %s99 = sld [smem:[#allocation3 + $0x101]]
    %s100 = sld [smem:[#allocation3 + $0x102]]
    %s101 = sld [smem:[#allocation3 + $0x103]]
    %s102 = sld [smem:[#allocation3 + $0x180]]
    %s103 = sld [smem:[#allocation3 + $0x181]]
    %s104 = sld [smem:[#allocation3 + $0x182]]
    %s105 = sld [smem:[#allocation3 + $0x183]]
    %s106 = sld [smem:[#allocation3 + $0x200]]
    %s107 = sld [smem:[#allocation3 + $0x201]]
    %s108 = sld [smem:[#allocation3 + $0x202]]
    %s109 = sld [smem:[#allocation3 + $0x203]]
    %s110 = sld [smem:[#allocation3 + $0x280]]
    %s111 = sld [smem:[#allocation3 + $0x281]]
    %s112 = sld [smem:[#allocation3 + $0x282]]
    %s113 = sld [smem:[#allocation3 + $0x283]]
    %s114 = sld [smem:[#allocation3 + $0x300]]
    %s115 = sld [smem:[#allocation3 + $0x301]]
    %s116 = sld [smem:[#allocation3 + $0x302]]
    %s117 = sld [smem:[#allocation3 + $0x303]]
    %s118 = sld [smem:[#allocation3 + $0x380]]
    %s119 = sld [smem:[#allocation3 + $0x381]]
    %s120 = sld [smem:[#allocation3 + $0x382]]
    %s121 = sld [smem:[#allocation3 + $0x383]]
    %s122 = sld [smem:[#allocation6]]
    %s123 = sld [smem:[#allocation6 + $0x1]]
    %s124 = sld [smem:[#allocation6 + $0x2]]
    %s125 = sld [smem:[#allocation6 + $0x3]]
    %s126 = sld [smem:[#allocation6 + $0x4]]
    %s127 = sld [smem:[#allocation6 + $0x5]]
    %s128 = sld [smem:[#allocation6 + $0x6]]
    %s129 = sld [smem:[#allocation6 + $0x7]]
    %s130 = sld [smem:[#allocation8]]
    %s131 = sld [smem:[#allocation8 + $0x1]]
    %s132 = sld [smem:[#allocation8 + $0x2]]
    %s133 = sld [smem:[#allocation8 + $0x3]]
    %s134 = sld [smem:[#allocation8 + $0x4]]
    %s135 = sld [smem:[#allocation8 + $0x5]]
    %s136 = sld [smem:[#allocation8 + $0x6]]
    %s137 = sld [smem:[#allocation8 + $0x7]]
    %s138 = sld [smem:[#allocation8 + $0x80]]
    %s139 = sld [smem:[#allocation8 + $0x81]]
    %s140 = sld [smem:[#allocation8 + $0x82]]
    %s141 = sld [smem:[#allocation8 + $0x83]]
    %s142 = sld [smem:[#allocation8 + $0x84]]
    %s143 = sld [smem:[#allocation8 + $0x85]]
    %s144 = sld [smem:[#allocation8 + $0x86]]
    %s145 = sld [smem:[#allocation8 + $0x87]]
    %s146 = sld [smem:[#allocation8 + $0x100]]
    %s147 = sld [smem:[#allocation8 + $0x101]]
    %s148 = sld [smem:[#allocation8 + $0x102]]
    %s149 = sld [smem:[#allocation8 + $0x103]]
    %s150 = sld [smem:[#allocation8 + $0x104]]
    %s151 = sld [smem:[#allocation8 + $0x105]]
    %s152 = sld [smem:[#allocation8 + $0x106]]
    %s153 = sld [smem:[#allocation8 + $0x107]]
    %s154 = sld [smem:[#allocation8 + $0x180]]
    %s155 = sld [smem:[#allocation8 + $0x181]]
    %s156 = sld [smem:[#allocation8 + $0x182]]
    %s157 = sld [smem:[#allocation8 + $0x183]]
    %s158 = sld [smem:[#allocation8 + $0x184]]
    %s159 = sld [smem:[#allocation8 + $0x185]]
    %s160 = sld [smem:[#allocation8 + $0x186]]
    %s161 = sld [smem:[#allocation8 + $0x187]]
    %s162 = sld [smem:[#allocation8 + $0x200]]
    %s163 = sld [smem:[#allocation8 + $0x201]]
    %s164 = sld [smem:[#allocation8 + $0x202]]
    %s165 = sld [smem:[#allocation8 + $0x203]]
    %s166 = sld [smem:[#allocation8 + $0x204]]
    %s167 = sld [smem:[#allocation8 + $0x205]]
    %s168 = sld [smem:[#allocation8 + $0x206]]
    %s169 = sld [smem:[#allocation8 + $0x207]]
    %s170 = sld [smem:[#allocation8 + $0x280]]
    %s171 = sld [smem:[#allocation8 + $0x281]]
    %s172 = sld [smem:[#allocation8 + $0x282]]
    %s173 = sld [smem:[#allocation8 + $0x283]]
    %s174 = sld [smem:[#allocation8 + $0x284]]
    %s175 = sld [smem:[#allocation8 + $0x285]]
    %s176 = sld [smem:[#allocation8 + $0x286]]
    %s177 = sld [smem:[#allocation8 + $0x287]]
    %s178 = sld [smem:[#allocation8 + $0x300]]
    %s179 = sld [smem:[#allocation8 + $0x301]]
    %s180 = sld [smem:[#allocation8 + $0x302]]
    %s181 = sld [smem:[#allocation8 + $0x303]]
    %s182 = sld [smem:[#allocation8 + $0x304]]
    %s183 = sld [smem:[#allocation8 + $0x305]]
    %s184 = sld [smem:[#allocation8 + $0x306]]
    %s185 = sld [smem:[#allocation8 + $0x307]]
    %s186 = sld [smem:[#allocation8 + $0x380]]
    %s187 = sld [smem:[#allocation8 + $0x381]]
    %s188 = sld [smem:[#allocation8 + $0x382]]
    %s189 = sld [smem:[#allocation8 + $0x383]]
    %s190 = sld [smem:[#allocation8 + $0x384]]
    %s191 = sld [smem:[#allocation8 + $0x385]]
    %s192 = sld [smem:[#allocation8 + $0x386]]
    %s193 = sld [smem:[#allocation8 + $0x387]]
    %s194 = sld [smem:[#allocation9]]
    %s195 = sld [smem:[#allocation9 + $0x1]]
    %s196 = sld [smem:[#allocation9 + $0x2]]
    %s197 = sld [smem:[#allocation9 + $0x3]]
    %s198 = sld [smem:[#allocation9 + $0x4]]
    %s199 = sld [smem:[#allocation9 + $0x5]]
    %s200 = sld [smem:[#allocation9 + $0x6]]
    %s201 = sld [smem:[#allocation9 + $0x7]]
    %s202 = sld [smem:[#allocation11]]
    %s203 = sld [smem:[#allocation11 + $0x1]]
    %s204 = sld [smem:[#allocation11 + $0x2]]
    %s205 = sld [smem:[#allocation11 + $0x3]]
    %s206 = sld [smem:[#allocation11 + $0x4]]
    %s207 = sld [smem:[#allocation11 + $0x5]]
    %s208 = sld [smem:[#allocation11 + $0x6]]
    %s209 = sld [smem:[#allocation11 + $0x7]]
    %s210 = sld [smem:[#allocation2]]
    %v211 = vld [vmem:[%s1] sm:$0x7]
    %s212 = sadd.s32 0, 4
    %s213 = scalar_lea.vmem %s1, %s212
    %v214 = vld [vmem:[%s213] sm:$0x7]
    %s215 = sadd.s32 0, 8
    %s216 = scalar_lea.vmem %s1, %s215
    %v217 = vld [vmem:[%s216] sm:$0x7]
    %s218 = sadd.s32 0, 12
    %s219 = scalar_lea.vmem %s1, %s218
    %v220 = vld [vmem:[%s219] sm:$0x7]
    %v221 = vstv %s90
    %v222 = vmul.f32 %v211, %v221
    %v223 = vstv %s91
    %v224 = vmul.f32 %v214, %v223
    %v225 = vadd.f32 %v222, %v224
    %v226 = vstv %s92
    %v227 = vmul.f32 %v217, %v226
    %v228 = vadd.f32 %v225, %v227
    %v229 = vstv %s93
    %v230 = vmul.f32 %v220, %v229
    %v231 = vadd.f32 %v228, %v230
    %v232 = vstv %s122
    %v233 = vadd.f32 %v231, %v232
    %v234 = vtanh.pop %v233
    %v235 = vstv %s94
    %v236 = vmul.f32 %v211, %v235
    %v237 = vstv %s95
    %v238 = vmul.f32 %v214, %v237
    %v239 = vadd.f32 %v236, %v238
    %v240 = vstv %s96
    %v241 = vmul.f32 %v217, %v240
    %v242 = vadd.f32 %v239, %v241
    %v243 = vstv %s97
    %v244 = vmul.f32 %v220, %v243
    %v245 = vadd.f32 %v242, %v244
    %v246 = vstv %s123
    %v247 = vadd.f32 %v245, %v246
    %v248 = vtanh.pop %v247
    %v249 = vstv %s98
    %v250 = vmul.f32 %v211, %v249
    %v251 = vstv %s99
    %v252 = vmul.f32 %v214, %v251
    %v253 = vadd.f32 %v250, %v252
    %v254 = vstv %s100
    %v255 = vmul.f32 %v217, %v254
    %v256 = vadd.f32 %v253, %v255
    %v257 = vstv %s101
    %v258 = vmul.f32 %v220, %v257
    %v259 = vadd.f32 %v256, %v258
    %v260 = vstv %s124
    %v261 = vadd.f32 %v259, %v260
    %v262 = vtanh.pop %v261
    %v263 = vstv %s102
    %v264 = vmul.f32 %v211, %v263
    %v265 = vstv %s103
    %v266 = vmul.f32 %v214, %v265
    %v267 = vadd.f32 %v264, %v266
    %v268 = vstv %s104
    %v269 = vmul.f32 %v217, %v268
    %v270 = vadd.f32 %v267, %v269
    %v271 = vstv %s105
    %v272 = vmul.f32 %v220, %v271
    %v273 = vadd.f32 %v270, %v272
    %v274 = vstv %s125
    %v275 = vadd.f32 %v273, %v274
    %v276 = vtanh.pop %v275
    %v277 = vstv %s106
    %v278 = vmul.f32 %v211, %v277
    %v279 = vstv %s107
    %v280 = vmul.f32 %v214, %v279
    %v281 = vadd.f32 %v278, %v280
    %v282 = vstv %s108
    %v283 = vmul.f32 %v217, %v282
    %v284 = vadd.f32 %v281, %v283
    %v285 = vstv %s109
    %v286 = vmul.f32 %v220, %v285
    %v287 = vadd.f32 %v284, %v286
    %v288 = vstv %s126
    %v289 = vadd.f32 %v287, %v288
    %v290 = vtanh.pop %v289
    %v291 = vstv %s110
    %v292 = vmul.f32 %v211, %v291
    %v293 = vstv %s111
    %v294 = vmul.f32 %v214, %v293
    %v295 = vadd.f32 %v292, %v294
    %v296 = vstv %s112
    %v297 = vmul.f32 %v217, %v296
    %v298 = vadd.f32 %v295, %v297
    %v299 = vstv %s113
    %v300 = vmul.f32 %v220, %v299
    %v301 = vadd.f32 %v298, %v300
    %v302 = vstv %s127
    %v303 = vadd.f32 %v301, %v302
    %v304 = vtanh.pop %v303
    %v305 = vstv %s114
    %v306 = vmul.f32 %v211, %v305
    %v307 = vstv %s115
    %v308 = vmul.f32 %v214, %v307
    %v309 = vadd.f32 %v306, %v308
    %v310 = vstv %s116
    %v311 = vmul.f32 %v217, %v310
    %v312 = vadd.f32 %v309, %v311
    %v313 = vstv %s117
    %v314 = vmul.f32 %v220, %v313
    %v315 = vadd.f32 %v312, %v314
    %v316 = vstv %s128
    %v317 = vadd.f32 %v315, %v316
    %v318 = vtanh.pop %v317
    %v319 = vstv %s118
    %v320 = vmul.f32 %v211, %v319
    %v321 = vstv %s119
    %v322 = vmul.f32 %v214, %v321
    %v323 = vadd.f32 %v320, %v322
    %v324 = vstv %s120
    %v325 = vmul.f32 %v217, %v324
    %v326 = vadd.f32 %v323, %v325
    %v327 = vstv %s121
    %v328 = vmul.f32 %v220, %v327
    %v329 = vadd.f32 %v326, %v328
    %v330 = vstv %s129
    %v331 = vadd.f32 %v329, %v330
    %v332 = vtanh.pop %v331
    %v333 = vstv %s130
    %v334 = vmul.f32 %v234, %v333
    %v335 = vstv %s131
    %v336 = vmul.f32 %v248, %v335
    %v337 = vadd.f32 %v334, %v336
    %v338 = vstv %s132
    %v339 = vmul.f32 %v262, %v338
    %v340 = vadd.f32 %v337, %v339
    %v341 = vstv %s133
    %v342 = vmul.f32 %v276, %v341
    %v343 = vadd.f32 %v340, %v342
    %v344 = vstv %s134
    %v345 = vmul.f32 %v290, %v344
    %v346 = vadd.f32 %v343, %v345
    %v347 = vstv %s135
    %v348 = vmul.f32 %v304, %v347
    %v349 = vadd.f32 %v346, %v348
    %v350 = vstv %s136
    %v351 = vmul.f32 %v318, %v350
    %v352 = vadd.f32 %v349, %v351
    %v353 = vstv %s137
    %v354 = vmul.f32 %v332, %v353
    %v355 = vadd.f32 %v352, %v354
    %v356 = vstv %s194
    %v357 = vadd.f32 %v355, %v356
    %v358 = vtanh.pop %v357
    %v359 = vstv %s202
    %v360 = vmul.f32 %v358, %v359
    %v361 = vstv %s138
    %v362 = vmul.f32 %v234, %v361
    %v363 = vstv %s139
    %v364 = vmul.f32 %v248, %v363
    %v365 = vadd.f32 %v362, %v364
    %v366 = vstv %s140
    %v367 = vmul.f32 %v262, %v366
    %v368 = vadd.f32 %v365, %v367
    %v369 = vstv %s141
    %v370 = vmul.f32 %v276, %v369
    %v371 = vadd.f32 %v368, %v370
    %v372 = vstv %s142
    %v373 = vmul.f32 %v290, %v372
    %v374 = vadd.f32 %v371, %v373
    %v375 = vstv %s143
    %v376 = vmul.f32 %v304, %v375
    %v377 = vadd.f32 %v374, %v376
    %v378 = vstv %s144
    %v379 = vmul.f32 %v318, %v378
    %v380 = vadd.f32 %v377, %v379
    %v381 = vstv %s145
    %v382 = vmul.f32 %v332, %v381
    %v383 = vadd.f32 %v380, %v382
    %v384 = vstv %s195
    %v385 = vadd.f32 %v383, %v384
    %v386 = vtanh.pop %v385
    %v387 = vstv %s203
    %v388 = vmul.f32 %v386, %v387
    %v389 = vadd.f32 %v360, %v388
    %v390 = vstv %s146
    %v391 = vmul.f32 %v234, %v390
    %v392 = vstv %s147
    %v393 = vmul.f32 %v248, %v392
    %v394 = vadd.f32 %v391, %v393
    %v395 = vstv %s148
    %v396 = vmul.f32 %v262, %v395
    %v397 = vadd.f32 %v394, %v396
    %v398 = vstv %s149
    %v399 = vmul.f32 %v276, %v398
    %v400 = vadd.f32 %v397, %v399
    %v401 = vstv %s150
    %v402 = vmul.f32 %v290, %v401
    %v403 = vadd.f32 %v400, %v402
    %v404 = vstv %s151
    %v405 = vmul.f32 %v304, %v404
    %v406 = vadd.f32 %v403, %v405
    %v407 = vstv %s152
    %v408 = vmul.f32 %v318, %v407
    %v409 = vadd.f32 %v406, %v408
    %v410 = vstv %s153
    %v411 = vmul.f32 %v332, %v410
    %v412 = vadd.f32 %v409, %v411
    %v413 = vstv %s196
    %v414 = vadd.f32 %v412, %v413
    %v415 = vtanh.pop %v414
    %v416 = vstv %s204
    %v417 = vmul.f32 %v415, %v416
    %v418 = vadd.f32 %v389, %v417
    %v419 = vstv %s154
    %v420 = vmul.f32 %v234, %v419
    %v421 = vstv %s155
    %v422 = vmul.f32 %v248, %v421
    %v423 = vadd.f32 %v420, %v422
    %v424 = vstv %s156
    %v425 = vmul.f32 %v262, %v424
    %v426 = vadd.f32 %v423, %v425
    %v427 = vstv %s157
    %v428 = vmul.f32 %v276, %v427
    %v429 = vadd.f32 %v426, %v428
    %v430 = vstv %s158
    %v431 = vmul.f32 %v290, %v430
    %v432 = vadd.f32 %v429, %v431
    %v433 = vstv %s159
    %v434 = vmul.f32 %v304, %v433
    %v435 = vadd.f32 %v432, %v434
    %v436 = vstv %s160
    %v437 = vmul.f32 %v318, %v436
    %v438 = vadd.f32 %v435, %v437
    %v439 = vstv %s161
    %v440 = vmul.f32 %v332, %v439
    %v441 = vadd.f32 %v438, %v440
    %v442 = vstv %s197
    %v443 = vadd.f32 %v441, %v442
    %v444 = vtanh.pop %v443
    %v445 = vstv %s205
    %v446 = vmul.f32 %v444, %v445
    %v447 = vadd.f32 %v418, %v446
    %v448 = vstv %s162
    %v449 = vmul.f32 %v234, %v448
    %v450 = vstv %s163
    %v451 = vmul.f32 %v248, %v450
    %v452 = vadd.f32 %v449, %v451
    %v453 = vstv %s164
    %v454 = vmul.f32 %v262, %v453
    %v455 = vadd.f32 %v452, %v454
    %v456 = vstv %s165
    %v457 = vmul.f32 %v276, %v456
    %v458 = vadd.f32 %v455, %v457
    %v459 = vstv %s166
    %v460 = vmul.f32 %v290, %v459
    %v461 = vadd.f32 %v458, %v460
    %v462 = vstv %s167
    %v463 = vmul.f32 %v304, %v462
    %v464 = vadd.f32 %v461, %v463
    %v465 = vstv %s168
    %v466 = vmul.f32 %v318, %v465
    %v467 = vadd.f32 %v464, %v466
    %v468 = vstv %s169
    %v469 = vmul.f32 %v332, %v468
    %v470 = vadd.f32 %v467, %v469
    %v471 = vstv %s198
    %v472 = vadd.f32 %v470, %v471
    %v473 = vtanh.pop %v472
    %v474 = vstv %s206
    %v475 = vmul.f32 %v473, %v474
    %v476 = vadd.f32 %v447, %v475
    %v477 = vstv %s170
    %v478 = vmul.f32 %v234, %v477
    %v479 = vstv %s171
    %v480 = vmul.f32 %v248, %v479
    %v481 = vadd.f32 %v478, %v480
    %v482 = vstv %s172
    %v483 = vmul.f32 %v262, %v482
    %v484 = vadd.f32 %v481, %v483
    %v485 = vstv %s173
    %v486 = vmul.f32 %v276, %v485
    %v487 = vadd.f32 %v484, %v486
    %v488 = vstv %s174
    %v489 = vmul.f32 %v290, %v488
    %v490 = vadd.f32 %v487, %v489
    %v491 = vstv %s175
    %v492 = vmul.f32 %v304, %v491
    %v493 = vadd.f32 %v490, %v492
    %v494 = vstv %s176
    %v495 = vmul.f32 %v318, %v494
    %v496 = vadd.f32 %v493, %v495
    %v497 = vstv %s177
    %v498 = vmul.f32 %v332, %v497
    %v499 = vadd.f32 %v496, %v498
    %v500 = vstv %s199
    %v501 = vadd.f32 %v499, %v500
    %v502 = vtanh.pop %v501
    %v503 = vstv %s207
    %v504 = vmul.f32 %v502, %v503
    %v505 = vadd.f32 %v476, %v504
    %v506 = vstv %s178
    %v507 = vmul.f32 %v234, %v506
    %v508 = vstv %s179
    %v509 = vmul.f32 %v248, %v508
    %v510 = vadd.f32 %v507, %v509
    %v511 = vstv %s180
    %v512 = vmul.f32 %v262, %v511
    %v513 = vadd.f32 %v510, %v512
    %v514 = vstv %s181
    %v515 = vmul.f32 %v276, %v514
    %v516 = vadd.f32 %v513, %v515
    %v517 = vstv %s182
    %v518 = vmul.f32 %v290, %v517
    %v519 = vadd.f32 %v516, %v518
    %v520 = vstv %s183
    %v521 = vmul.f32 %v304, %v520
    %v522 = vadd.f32 %v519, %v521
    %v523 = vstv %s184
    %v524 = vmul.f32 %v318, %v523
    %v525 = vadd.f32 %v522, %v524
    %v526 = vstv %s185
    %v527 = vmul.f32 %v332, %v526
    %v528 = vadd.f32 %v525, %v527
    %v529 = vstv %s200
    %v530 = vadd.f32 %v528, %v529
    %v531 = vtanh.pop %v530
    %v532 = vstv %s208
    %v533 = vmul.f32 %v531, %v532
    %v534 = vadd.f32 %v505, %v533
    %v535 = vstv %s186
    %v536 = vmul.f32 %v234, %v535
    %v537 = vstv %s187
    %v538 = vmul.f32 %v248, %v537
    %v539 = vadd.f32 %v536, %v538
    %v540 = vstv %s188
    %v541 = vmul.f32 %v262, %v540
    %v542 = vadd.f32 %v539, %v541
    %v543 = vstv %s189
    %v544 = vmul.f32 %v276, %v543
    %v545 = vadd.f32 %v542, %v544
    %v546 = vstv %s190
    %v547 = vmul.f32 %v290, %v546
    %v548 = vadd.f32 %v545, %v547
    %v549 = vstv %s191
    %v550 = vmul.f32 %v304, %v549
    %v551 = vadd.f32 %v548, %v550
    %v552 = vstv %s192
    %v553 = vmul.f32 %v318, %v552
    %v554 = vadd.f32 %v551, %v553
    %v555 = vstv %s193
    %v556 = vmul.f32 %v332, %v555
    %v557 = vadd.f32 %v554, %v556
    %v558 = vstv %s201
    %v559 = vadd.f32 %v557, %v558
    %v560 = vtanh.pop %v559
    %v561 = vstv %s209
    %v562 = vmul.f32 %v560, %v561
    %v563 = vadd.f32 %v534, %v562
    %v564 = vstv %s210
    %v565 = vadd.f32 %v563, %v564
    %v566 = vld [vmem:[%s0] sm:$0x7]
    %v567 = vmax.f32 %v565, 0.0
    %v568 = vmul.f32 %v565, %v566
    %v569 = vsub.f32 %v567, %v568
    %v570 = vand.u32 2147483647, %v565
    %v571 = vsub.f32 0.0, %v570
    %v572 = vmul.f32 %v571, 1.442695
    %v573 = vpow.pop %v572
    %v574 = vadd.f32 %v573, 1.0
    %v575 = vlog2.pop %v574
    %v576 = vmul.f32 %v575, 0.6931472
    %v577 = vadd.f32 %v569, %v576
    %578 = vst [vmem:[#allocation12] sm:$0x7] %v577
    // Predicated region
    $region54: #{tpu_custom_call.1} parent=1 // pred_check
      _
    $region55: #{tpu_custom_call.1} parent=1 // pred_check_branch
      %580 = sbr.rel (0) target = $region57
    $region56: #{tpu_custom_call.1} parent=1 // pred_region
      %582 = vsyncadd [#allocation4], 0
      %s584 = sshll.u32 [#allocation12], 4
      %s585 = int_to_ptr.vmem [resolvable:$true] %s584
      %s586 = sshll.u32 %s8, 4
      %s587 = int_to_ptr.hbm [resolvable:$true] %s586
      %589 = dma.vmem_to_hbm [thread:$0]  %s585, 64, %s587, [#allocation4]
    $region57: #{tpu_custom_call.1} parent=1 // pred_fallthru
      _
    // Predicated region
    $region58: #{tpu_custom_call.1} parent=1 // pred_check
      _
    $region59: #{tpu_custom_call.1} parent=1 // pred_check_branch
      %591 = sbr.rel (0) target = $region61
    $region60: #{tpu_custom_call.1} parent=1 // pred_region
      %593 = dma.done [#allocation4], 64
    $region61: #{tpu_custom_call.1} parent=1 // pred_fallthru
      _
    %594 = vsyncpa [#allocation4], 1
    %595 = vsyncpa [#allocation5], 1
    %596 = vsyncpa [#allocation7], 1
    %597 = vsyncpa [#allocation10], 1

</llo_original>
